<compile_context>
chip_gen: v5e
topology: v5e:2x2
jax: 0.10.0
libtpu: 0.0.40
codegen_flags: <defaults>
</compile_context>

<pallas_src>
import functools

import jax
import jax.numpy as jnp
import numpy as np
from jax.experimental import pallas as pl
from jax.experimental.pallas import tpu as pltpu


def _pair(v):
    return (v, v) if isinstance(v, int) else tuple(v)


def _quadruple(v):
    return (v, v, v, v) if isinstance(v, int) else tuple(v)


def _compute_padding(x_shape, k, s, padding, same):
    if same:
        ih, iw = x_shape[2], x_shape[3]
        if ih % s[0] == 0:
            ph = max(k[0] - s[0], 0)
        else:
            ph = max(k[0] - ih % s[0], 0)
        if iw % s[1] == 0:
            pw = max(k[1] - s[1], 0)
        else:
            pw = max(k[1] - iw % s[1], 0)
        p_l = pw // 2
        p_r = pw - p_l
        p_t = ph // 2
        p_b = ph - p_t
        return (p_l, p_r, p_t, p_b)
    return _quadruple(padding)


# ---------------------------------------------------------------------------
# Median-selection networks (pure VPU min/max compare-exchanges).
# ---------------------------------------------------------------------------

def _compare_exchange(a, b):
    return jnp.minimum(a, b), jnp.maximum(a, b)


# Paeth / Smith median-of-9: 19 compare-exchanges, median ends in p[4].
_MEDIAN9_PAIRS = (
    (1, 2), (4, 5), (7, 8), (0, 1), (3, 4), (6, 7), (1, 2), (4, 5), (7, 8),
    (0, 3), (5, 8), (4, 7), (3, 6), (1, 4), (2, 5), (4, 7), (4, 2), (6, 4),
    (4, 2),
)


def _median_of_9(vals):
    p = list(vals)
    for i, j in _MEDIAN9_PAIRS:
        p[i], p[j] = _compare_exchange(p[i], p[j])
    return p[4]


def _select_rank(vals, rank):
    """Rank-`rank` element via an odd-even transposition network pruned to the
    cone of influence of that output wire (a value moves at most one wire per
    pass, so pass p only needs comparators within n-1-p wires of `rank`)."""
    p = list(vals)
    n = len(p)
    for pass_idx in range(n):
        rad = n - 1 - pass_idx
        lo, hi = rank - rad - 1, rank + rad
        for i in range(pass_idx % 2, n - 1, 2):
            if lo <= i <= hi:
                p[i], p[i + 1] = _compare_exchange(p[i], p[i + 1])
    return p[rank]


def _median_select(vals):
    n = len(vals)
    if n == 1:
        return vals[0]
    if n == 9:
        return _median_of_9(vals)
    return _select_rank(vals, (n - 1) // 2)   # torch.median -> LOWER median


# ---------------------------------------------------------------------------
# Pallas kernel
# ---------------------------------------------------------------------------

def _median_pool_kernel(rmap_ref, x_ref, o_ref, *, kh, kw, th, p_l, p_r,
                        w_in, wo_full, compute_dtype):
    """One grid step: stride-1 medians for a (tile_nc, th, wo_full) output slab.

    rmap_ref: SMEM int32 map: padded-row index -> reflected source row in [0, H).
    x_ref:    (tile_nc, H, W) unpadded input planes (resident across the h axis).
    o_ref:    (tile_nc, th, wo_full) output rows [h*th, h*th + th).
    """
    t = pl.program_id(1)
    base = t * th

    # Gather the th + kh - 1 source rows for this slab.  The H reflect padding
    # is folded into the row map, so boundary tiles need no special casing.
    # Each load is a (tile_nc, 1, W) dynamic-row read (ld/st slots, which have
    # slack under the min/max network saturating the VALU slot).
    rows = []
    for i in range(th + kh - 1):
        src = rmap_ref[base + i]
        rows.append(x_ref[:, pl.ds(src, 1), :])
    slab = rows[0] if len(rows) == 1 else jnp.concatenate(rows, axis=1)

    # Reflect-pad the W (lane) axis with a few static single-column slices.
    parts = []
    for j in range(p_l):
        parts.append(slab[:, :, p_l - j:p_l - j + 1])
    parts.append(slab)
    for j in range(p_r):
        parts.append(slab[:, :, w_in - 2 - j:w_in - 1 - j])
    padded = parts[0] if len(parts) == 1 else jnp.concatenate(parts, axis=2)
    padded = padded.astype(compute_dtype)

    # kh*kw shifted windows; every temporary is (tile_nc, th, wo_full), i.e.
    # vreg-scale — never full planes.
    windows = []
    for ki in range(kh):
        for kj in range(kw):
            windows.append(padded[:, ki:ki + th, kj:kj + wo_full])

    med = _median_select(windows)
    o_ref[...] = med.astype(o_ref.dtype)


# ---------------------------------------------------------------------------
# Wrapper
# ---------------------------------------------------------------------------

def _device_kind():
    try:
        return jax.devices()[0].device_kind.lower()
    except Exception:
        return ""


def _compute_dtype_for(in_dtype):
    """bf16 stays bf16 on chips with a native bf16 VALU (v6e/v7x); widen on v4/v5."""
    if in_dtype != jnp.bfloat16:
        return in_dtype
    kind = _device_kind()
    if "v4" in kind or "v5" in kind:
        return jnp.float32
    return in_dtype


@functools.partial(jax.jit,
                   static_argnames=("kernel_size", "stride", "padding", "same"))
def median_pool2d(x, kernel_size=3, stride=1, padding=0, same=False):
    """Pallas-backed equivalent of MedianPool2d.forward (NCHW input)."""
    k = _pair(kernel_size)
    s = _pair(stride)
    p_l, p_r, p_t, p_b = _compute_padding(x.shape, k, s, padding, same)
    kh, kw = k
    sh, sw = s
    N, C, H, W = x.shape
    NC = N * C

    # torch F.pad(mode='reflect') constraint: pad < spatial dim.
    assert p_t < H and p_b < H and p_l < W and p_r < W, "reflect pad must be < dim"

    Hp, Wp = H + p_t + p_b, W + p_l + p_r
    assert Hp >= kh and Wp >= kw, "kernel larger than padded input"
    Ho = (Hp - kh) // sh + 1
    Wo = (Wp - kw) // sw + 1
    Ho_full = Hp - kh + 1              # stride-1 output rows computed in-kernel
    Wo_full = Wp - kw + 1

    compute_dtype = _compute_dtype_for(x.dtype)

    # Output-row tile height (sublane granularity; larger tiles amortize the
    # per-grid-step overhead and the (kh-1)-row halo re-gather).
    TH = 8 if Ho_full <= 128 else 32
    grid_h = -(-Ho_full // TH)
    Ho_alloc = grid_h * TH             # rows >= Ho_full are trimmed by the wrapper

    # Padded-row -> reflected source-row map.  Covers the alloc slack rows too,
    # clamped so in-kernel reads never go out of bounds (those rows are trimmed).
    rp = np.arange(Ho_alloc + kh - 1)
    q = rp - p_t
    src = np.where(q < 0, -q, q)
    src = np.where(src > H - 1, 2 * (H - 1) - src, src)
    row_map = jnp.asarray(np.clip(src, 0, H - 1).astype(np.int32))

    # How many N*C planes ride one block: the largest divisor of NC that fits a
    # per-generation VMEM budget (v7x has half the VMEM of v5e/v6e).
    kind = _device_kind()
    if "v7" in kind:
        phys_vmem, vmem_cap = 64 * 2**20, 60 * 2**20
    else:
        phys_vmem, vmem_cap = 128 * 2**20, 110 * 2**20
    in_item = np.dtype(x.dtype).itemsize
    c_item = np.dtype(compute_dtype).itemsize
    per_plane = ((2 * H * W + 2 * TH * Wo_full) * in_item            # dbl-buffered in/out
                 + ((TH + kh - 1) * Wp + (kh * kw + 2) * TH * Wp) * c_item)  # live temps
    budget = int(0.45 * phys_vmem)
    tile_nc = 1
    for d in range(1, NC + 1):
        if NC % d == 0 and d * per_plane <= budget:
            tile_nc = d
    grid_nc = NC // tile_nc
    vmem_limit = int(min(max(2 * tile_nc * per_plane, 32 * 2**20), vmem_cap))

    kern = functools.partial(
        _median_pool_kernel,
        kh=kh, kw=kw, th=TH, p_l=p_l, p_r=p_r, w_in=W, wo_full=Wo_full,
        compute_dtype=compute_dtype,
    )

    x3 = x.reshape(NC, H, W)           # metadata-only reshape: no HBM traffic

    out_full = pl.pallas_call(
        kern,
        out_shape=jax.ShapeDtypeStruct((NC, Ho_alloc, Wo_full), x.dtype),
        grid_spec=pltpu.PrefetchScalarGridSpec(
            num_scalar_prefetch=1,
            grid=(grid_nc, grid_h),    # h inner -> input block stays resident per c
            in_specs=[pl.BlockSpec((tile_nc, H, W), lambda c, h, rmap: (c, 0, 0))],
            out_specs=pl.BlockSpec((tile_nc, TH, Wo_full), lambda c, h, rmap: (c, h, 0)),
        ),
        compiler_params=pltpu.CompilerParams(
            # Both axes are independent; >= 2 steps so both v7x cores get work.
            dimension_semantics=("parallel", "parallel"),
            vmem_limit_bytes=vmem_limit,
        ),
    )(row_map, x3)

    out = out_full[:, :Ho_full, :]
    if sh != 1 or sw != 1:
        # TODO(synk): fold the stride into the kernel to skip computing the
        # discarded positions; median-filter usage (stride=1) pays nothing here.
        out = out[:, ::sh, ::sw]
    return out.reshape(N, C, Ho, Wo)


# ---------------------------------------------------------------------------
# Pure-JAX reference mirroring the PyTorch forward (for verification).
# ---------------------------------------------------------------------------

def median_pool2d_ref(x, kernel_size=3, stride=1, padding=0, same=False):
    k = _pair(kernel_size)
    s = _pair(stride)
    p_l, p_r, p_t, p_b = _compute_padding(x.shape, k, s, padding, same)
    xp = jnp.pad(x, ((0, 0), (0, 0), (p_t, p_b), (p_l, p_r)), mode="reflect")
    Hp, Wp = xp.shape[2], xp.shape[3]
    Ho = (Hp - k[0]) // s[0] + 1
    Wo = (Wp - k[1]) // s[1] + 1
    patches = []
    for ki in range(k[0]):
        for kj in range(k[1]):
            patches.append(
                xp[:, :, ki:ki + (Ho - 1) * s[0] + 1:s[0],
                         kj:kj + (Wo - 1) * s[1] + 1:s[1]])
    stacked = jnp.stack(patches, axis=-1)            # (N, C, Ho, Wo, kh*kw)
    srt = jnp.sort(stacked, axis=-1)
    return srt[..., (k[0] * k[1] - 1) // 2]           # torch lower-median


if __name__ == "__main__":
    key = jax.random.PRNGKey(0)
    x = jax.random.normal(key, (2, 4, 16, 16), dtype=jnp.float32)

    # Canonical feature-squeezing usage: 3x3 median filter, stride 1, "same"
    # reflect padding -> output shape == input shape.
    out = jax.block_until_ready(
        median_pool2d(x, kernel_size=3, stride=1, padding=0, same=True))
    ref = median_pool2d_ref(x, kernel_size=3, stride=1, padding=0, same=True)
    np.testing.assert_array_equal(np.asarray(out), np.asarray(ref))
    assert out.shape == (2, 4, 16, 16) and out.dtype == x.dtype

    # Exact-match checks over more kernel sizes / strides / pads (exercises the
    # pruned selection network for n=25, n=4 and n=6, and the stride path).
    extra_cases = (
        dict(kernel_size=5, stride=1, padding=0, same=True),
        dict(kernel_size=2, stride=1, padding=0, same=False),
        dict(kernel_size=(3, 2), stride=2, padding=1, same=False),
    )
    for cfg in extra_cases:
        got = jax.block_until_ready(median_pool2d(x, **cfg))
        want = median_pool2d_ref(x, **cfg)
        np.testing.assert_array_equal(np.asarray(got), np.asarray(want))

    print("KERNEL_OK")
</pallas_src>

<mosaic_0001>
module attributes {stable_mosaic.version = 11 : i64} {
  func.func @_median_pool_kernel(%arg0: i32, %arg1: i32, %arg2: memref<18xi32, #tpu.memory_space<smem>>, %arg3: memref<8x16x16xf32, #tpu.memory_space<vmem>>, %arg4: memref<8x8x16xf32, #tpu.memory_space<vmem>>) attributes {dimension_semantics = [#tpu.dimension_semantics<parallel>, #tpu.dimension_semantics<parallel>], iteration_bounds = array<i64: 1, 2>, scalar_prefetch = 1 : i64, scratch_operands = 0 : i64, tpu.core_type = #tpu.core_type<tc>, window_params = [{transform_indices = @transform_0, window_bounds = array<i64: 8, 16, 16>}, {transform_indices = @transform_1, window_bounds = array<i64: 8, 8, 16>}]} {
    %c8_i32 = arith.constant 8 : i32
    %0 = arith.muli %arg1, %c8_i32 : i32
    %c0_i32 = arith.constant 0 : i32
    %1 = arith.addi %0, %c0_i32 : i32
    %2 = arith.index_cast %1 : i32 to index
    %3 = memref.load %arg2[%2] : memref<18xi32, #tpu.memory_space<smem>>
    %c0 = arith.constant 0 : index
    %4 = arith.index_cast %3 : i32 to index
    %c0_0 = arith.constant 0 : index
    %5 = vector.load %arg3[%c0, %4, %c0_0] : memref<8x16x16xf32, #tpu.memory_space<vmem>>, vector<8x1x16xf32>
    %c1_i32 = arith.constant 1 : i32
    %6 = arith.addi %0, %c1_i32 : i32
    %7 = arith.index_cast %6 : i32 to index
    %8 = memref.load %arg2[%7] : memref<18xi32, #tpu.memory_space<smem>>
    %c0_1 = arith.constant 0 : index
    %9 = arith.index_cast %8 : i32 to index
    %c0_2 = arith.constant 0 : index
    %10 = vector.load %arg3[%c0_1, %9, %c0_2] : memref<8x16x16xf32, #tpu.memory_space<vmem>>, vector<8x1x16xf32>
    %c2_i32 = arith.constant 2 : i32
    %11 = arith.addi %0, %c2_i32 : i32
    %12 = arith.index_cast %11 : i32 to index
    %13 = memref.load %arg2[%12] : memref<18xi32, #tpu.memory_space<smem>>
    %c0_3 = arith.constant 0 : index
    %14 = arith.index_cast %13 : i32 to index
    %c0_4 = arith.constant 0 : index
    %15 = vector.load %arg3[%c0_3, %14, %c0_4] : memref<8x16x16xf32, #tpu.memory_space<vmem>>, vector<8x1x16xf32>
    %c3_i32 = arith.constant 3 : i32
    %16 = arith.addi %0, %c3_i32 : i32
    %17 = arith.index_cast %16 : i32 to index
    %18 = memref.load %arg2[%17] : memref<18xi32, #tpu.memory_space<smem>>
    %c0_5 = arith.constant 0 : index
    %19 = arith.index_cast %18 : i32 to index
    %c0_6 = arith.constant 0 : index
    %20 = vector.load %arg3[%c0_5, %19, %c0_6] : memref<8x16x16xf32, #tpu.memory_space<vmem>>, vector<8x1x16xf32>
    %c4_i32 = arith.constant 4 : i32
    %21 = arith.addi %0, %c4_i32 : i32
    %22 = arith.index_cast %21 : i32 to index
    %23 = memref.load %arg2[%22] : memref<18xi32, #tpu.memory_space<smem>>
    %c0_7 = arith.constant 0 : index
    %24 = arith.index_cast %23 : i32 to index
    %c0_8 = arith.constant 0 : index
    %25 = vector.load %arg3[%c0_7, %24, %c0_8] : memref<8x16x16xf32, #tpu.memory_space<vmem>>, vector<8x1x16xf32>
    %c5_i32 = arith.constant 5 : i32
    %26 = arith.addi %0, %c5_i32 : i32
    %27 = arith.index_cast %26 : i32 to index
    %28 = memref.load %arg2[%27] : memref<18xi32, #tpu.memory_space<smem>>
    %c0_9 = arith.constant 0 : index
    %29 = arith.index_cast %28 : i32 to index
    %c0_10 = arith.constant 0 : index
    %30 = vector.load %arg3[%c0_9, %29, %c0_10] : memref<8x16x16xf32, #tpu.memory_space<vmem>>, vector<8x1x16xf32>
    %c6_i32 = arith.constant 6 : i32
    %31 = arith.addi %0, %c6_i32 : i32
    %32 = arith.index_cast %31 : i32 to index
    %33 = memref.load %arg2[%32] : memref<18xi32, #tpu.memory_space<smem>>
    %c0_11 = arith.constant 0 : index
    %34 = arith.index_cast %33 : i32 to index
    %c0_12 = arith.constant 0 : index
    %35 = vector.load %arg3[%c0_11, %34, %c0_12] : memref<8x16x16xf32, #tpu.memory_space<vmem>>, vector<8x1x16xf32>
    %c7_i32 = arith.constant 7 : i32
    %36 = arith.addi %0, %c7_i32 : i32
    %37 = arith.index_cast %36 : i32 to index
    %38 = memref.load %arg2[%37] : memref<18xi32, #tpu.memory_space<smem>>
    %c0_13 = arith.constant 0 : index
    %39 = arith.index_cast %38 : i32 to index
    %c0_14 = arith.constant 0 : index
    %40 = vector.load %arg3[%c0_13, %39, %c0_14] : memref<8x16x16xf32, #tpu.memory_space<vmem>>, vector<8x1x16xf32>
    %c8_i32_15 = arith.constant 8 : i32
    %41 = arith.addi %0, %c8_i32_15 : i32
    %42 = arith.index_cast %41 : i32 to index
    %43 = memref.load %arg2[%42] : memref<18xi32, #tpu.memory_space<smem>>
    %c0_16 = arith.constant 0 : index
    %44 = arith.index_cast %43 : i32 to index
    %c0_17 = arith.constant 0 : index
    %45 = vector.load %arg3[%c0_16, %44, %c0_17] : memref<8x16x16xf32, #tpu.memory_space<vmem>>, vector<8x1x16xf32>
    %c9_i32 = arith.constant 9 : i32
    %46 = arith.addi %0, %c9_i32 : i32
    %47 = arith.index_cast %46 : i32 to index
    %48 = memref.load %arg2[%47] : memref<18xi32, #tpu.memory_space<smem>>
    %c0_18 = arith.constant 0 : index
    %49 = arith.index_cast %48 : i32 to index
    %c0_19 = arith.constant 0 : index
    %50 = vector.load %arg3[%c0_18, %49, %c0_19] : memref<8x16x16xf32, #tpu.memory_space<vmem>>, vector<8x1x16xf32>
    %51 = tpu.concatenate %5, %10, %15, %20, %25, %30, %35, %40, %45, %50 in 1 : vector<8x1x16xf32>, vector<8x1x16xf32>, vector<8x1x16xf32>, vector<8x1x16xf32>, vector<8x1x16xf32>, vector<8x1x16xf32>, vector<8x1x16xf32>, vector<8x1x16xf32>, vector<8x1x16xf32>, vector<8x1x16xf32> -> vector<8x10x16xf32>
    %52 = vector.extract_strided_slice %51 {offsets = [0, 0, 1], sizes = [8, 10, 1], strides = [1, 1, 1]} : vector<8x10x16xf32> to vector<8x10x1xf32>
    %53 = vector.extract_strided_slice %51 {offsets = [0, 0, 14], sizes = [8, 10, 1], strides = [1, 1, 1]} : vector<8x10x16xf32> to vector<8x10x1xf32>
    %54 = tpu.concatenate %52, %51, %53 in 2 : vector<8x10x1xf32>, vector<8x10x16xf32>, vector<8x10x1xf32> -> vector<8x10x18xf32>
    %55 = vector.extract_strided_slice %54 {offsets = [0, 0, 0], sizes = [8, 8, 16], strides = [1, 1, 1]} : vector<8x10x18xf32> to vector<8x8x16xf32>
    %56 = vector.extract_strided_slice %54 {offsets = [0, 0, 1], sizes = [8, 8, 16], strides = [1, 1, 1]} : vector<8x10x18xf32> to vector<8x8x16xf32>
    %57 = vector.extract_strided_slice %54 {offsets = [0, 0, 2], sizes = [8, 8, 16], strides = [1, 1, 1]} : vector<8x10x18xf32> to vector<8x8x16xf32>
    %58 = vector.extract_strided_slice %54 {offsets = [0, 1, 0], sizes = [8, 8, 16], strides = [1, 1, 1]} : vector<8x10x18xf32> to vector<8x8x16xf32>
    %59 = vector.extract_strided_slice %54 {offsets = [0, 1, 1], sizes = [8, 8, 16], strides = [1, 1, 1]} : vector<8x10x18xf32> to vector<8x8x16xf32>
    %60 = vector.extract_strided_slice %54 {offsets = [0, 1, 2], sizes = [8, 8, 16], strides = [1, 1, 1]} : vector<8x10x18xf32> to vector<8x8x16xf32>
    %61 = vector.extract_strided_slice %54 {offsets = [0, 2, 0], sizes = [8, 8, 16], strides = [1, 1, 1]} : vector<8x10x18xf32> to vector<8x8x16xf32>
    %62 = vector.extract_strided_slice %54 {offsets = [0, 2, 1], sizes = [8, 8, 16], strides = [1, 1, 1]} : vector<8x10x18xf32> to vector<8x8x16xf32>
    %63 = vector.extract_strided_slice %54 {offsets = [0, 2, 2], sizes = [8, 8, 16], strides = [1, 1, 1]} : vector<8x10x18xf32> to vector<8x8x16xf32>
    %64 = arith.minimumf %56, %57 : vector<8x8x16xf32>
    %65 = arith.maximumf %56, %57 : vector<8x8x16xf32>
    %66 = arith.minimumf %59, %60 : vector<8x8x16xf32>
    %67 = arith.maximumf %59, %60 : vector<8x8x16xf32>
    %68 = arith.minimumf %62, %63 : vector<8x8x16xf32>
    %69 = arith.maximumf %62, %63 : vector<8x8x16xf32>
    %70 = arith.minimumf %55, %64 : vector<8x8x16xf32>
    %71 = arith.maximumf %55, %64 : vector<8x8x16xf32>
    %72 = arith.minimumf %58, %66 : vector<8x8x16xf32>
    %73 = arith.maximumf %58, %66 : vector<8x8x16xf32>
    %74 = arith.minimumf %61, %68 : vector<8x8x16xf32>
    %75 = arith.maximumf %61, %68 : vector<8x8x16xf32>
    %76 = arith.minimumf %71, %65 : vector<8x8x16xf32>
    %77 = arith.maximumf %71, %65 : vector<8x8x16xf32>
    %78 = arith.minimumf %73, %67 : vector<8x8x16xf32>
    %79 = arith.maximumf %73, %67 : vector<8x8x16xf32>
    %80 = arith.minimumf %75, %69 : vector<8x8x16xf32>
    %81 = arith.maximumf %75, %69 : vector<8x8x16xf32>
    %82 = arith.maximumf %70, %72 : vector<8x8x16xf32>
    %83 = arith.minimumf %79, %81 : vector<8x8x16xf32>
    %84 = arith.minimumf %78, %80 : vector<8x8x16xf32>
    %85 = arith.maximumf %78, %80 : vector<8x8x16xf32>
    %86 = arith.maximumf %82, %74 : vector<8x8x16xf32>
    %87 = arith.maximumf %76, %84 : vector<8x8x16xf32>
    %88 = arith.minimumf %77, %83 : vector<8x8x16xf32>
    %89 = arith.minimumf %87, %85 : vector<8x8x16xf32>
    %90 = arith.minimumf %89, %88 : vector<8x8x16xf32>
    %91 = arith.maximumf %89, %88 : vector<8x8x16xf32>
    %92 = arith.maximumf %86, %90 : vector<8x8x16xf32>
    %93 = arith.minimumf %92, %91 : vector<8x8x16xf32>
    %c0_20 = arith.constant 0 : index
    %c0_21 = arith.constant 0 : index
    %c0_22 = arith.constant 0 : index
    %94 = vector.load %arg4[%c0_20, %c0_21, %c0_22] : memref<8x8x16xf32, #tpu.memory_space<vmem>>, vector<8x8x16xf32>
    tpu.vector_store %arg4[%c0_20, %c0_21, %c0_22], %93 {strides = array<i32>} : memref<8x8x16xf32, #tpu.memory_space<vmem>>, vector<8x8x16xf32>,
    return
  }
  func.func @transform_0(%arg0: i32, %arg1: i32, %arg2: memref<18xi32, #tpu.memory_space<smem>>) -> (i32, i32, i32) {
    %c0_i32 = arith.constant 0 : i32
    %c0_i32_0 = arith.constant 0 : i32
    %c0_i32_1 = arith.constant 0 : i32
    return %arg0, %c0_i32, %c0_i32_0 : i32, i32, i32
  }
  func.func @transform_1(%arg0: i32, %arg1: i32, %arg2: memref<18xi32, #tpu.memory_space<smem>>) -> (i32, i32, i32) {
    %c0_i32 = arith.constant 0 : i32
    %c0_i32_0 = arith.constant 0 : i32
    return %arg0, %arg1, %c0_i32 : i32, i32, i32
  }
}

</mosaic_0001>

<llo_original>
// kernel: median_pool2d.1
$region0: #{median_pool2d.1}
  #allocation0 [shape = 'u32[]', space=smem, size = 0x4, offset = 0x4, fixed_abs, tag = 'smem constant byte address 0x4 - core index']
  #allocation1 [shape = 'u32[72,128]{1,0:T(1,128)}', space=vmem, size = 0x9000, scoped, tag = 'internal scratch']
  #allocation2 [shape = 's32[1]{0}', space=sflag, size = 0x4, scoped, tag = 'scoped memory for median_pool2d.1']
  #allocation3 [shape = 'u8[512]{0}', space=smem, size = 0x200, scoped, tag = 'prefetched SMEM operand 0']
  %s0 = inlined_call_operand.vmem [shape: s32[18], index: 0, kind: input, shape index: {}]
  %s1 = inlined_call_operand.hbm [shape: f32[8,16,16], index: 1, kind: input, shape index: {}]
  %s2 = inlined_call_operand.hbm [shape: f32[8,16,16], index: 2, kind: output, shape index: {}]
  %s3 = sld [smem:[#allocation0]]
  $region41: #{median_pool2d.1} parent=0
    _
  %s5 = ssub.s32 1, %s3
  %s6 = scalar_select 0, %s5, %s3
  %s8 = sshll.u32 %s0, 4
  %s9 = int_to_ptr.vmem [resolvable:$true] %s8
  %11 = dma.vmem_to_smem %s9, 16, [#allocation3], [#allocation2]
  %13 = dma.done [#allocation2], 16
  %14 = sfence
  $region1: #{median_pool2d.1} parent=0
    #allocation4 [shape = 'u8[65536]{0}', space=vmem, size = 0x10000, scoped, tag = 'input window, operand 1, single buffered']
    #allocation5 [shape = 's32[2]{0}', space=sflag, size = 0x8, scoped, tag = 'scoped memory for median_pool2d.1']
    #allocation6 [shape = 's32[2]{0}', space=sflag, size = 0x8, scoped, tag = 'scoped memory for median_pool2d.1']
    #allocation7 [shape = 'u8[65536]{0}', space=vmem, size = 0x10000, scoped, tag = 'output window, operand 0']
    %15 = vsyncpa [#allocation5], 0
    %16 = vsyncpa [#allocation6], 0
    %s17 = scalar_lea.sflag [#allocation6], 1
    %18 = vsyncpa %s17, 0
    loop: start=0, step=1, limit=4
    $region2: #{median_pool2d.1} parent=1 // loop_pre_header
      _
    $region3: #{median_pool2d.1} parent=1 // loop_header
      %s20 = sphi 0, %s24
      %p21 = scmp.ge.s32.totalorder %s20, 4
      %s27 = sphi 0, %s39
      %s28 = sphi 0, %s35
      %s29 = sphi 0, %s27
      %s30 = sphi 0, %s28
      %s31 = sphi 0, %s29
      %s32 = sphi 0, %s30
      %s42 = sphi 0, %s44
      %s45 = sphi 0, %s42
      %s46 = sphi 0, %s45
      %s62 = sphi 0, %s46
      %s70 = sphi 0, %s72
      %s73 = sphi 0, %s70
      %s74 = sphi 0, %s73
      %s90 = sphi 0, %s74
    $region4: #{median_pool2d.1} parent=1 // loop_header_branch
      %23 = sbr.rel (%p21) target = $region8
    $region5: #{median_pool2d.1} parent=1 // loop_body
      %s25 = ssub.s32 %s20, 1
      %s26 = ssub.s32 %s20, 2
      %s33 = sadd.s32 1, %s28
      %p34 = scmp.ge.s32.totalorder %s33, 2
      %s35 = scalar_select %p34, 0, %s33
      %s36 = sadd.s32 1, %s27
      %s37 = scalar_select %p34, %s36, %s27
      %p38 = scmp.ge.s32.totalorder %s37, 1
      %s39 = scalar_select %p38, 0, %s37
      %s40 = ssub.s32 %s27, %s39
      %p41 = scmp.eq.s32.totalorder %s40, 0
      %s43 = sadd.s32 %s42, 1
      %s44 = scalar_select %p41, %s42, %s43
      %p47 = pneg %p41
      %p48 = scmp.eq.s32.totalorder %s20, 1
      %p49 = por %p47, %p48
      %p50 = scmp.ne.s32.totalorder %s42, %s45
      %p51 = scmp.eq.s32.totalorder %s20, 0
      %p52 = por %p50, %p51
      %p53 = scmp.ne.s32.totalorder %s42, %s45
      %p54 = scmp.eq.s32.totalorder %s25, 1
      %p55 = por %p53, %p54
      %p56 = scmp.ne.s32.totalorder %s45, %s46
      %p57 = scmp.eq.s32.totalorder %s25, 0
      %p58 = por %p56, %p57
      %p59 = scmp.ne.s32.totalorder %s45, %s46
      %p60 = scmp.eq.s32.totalorder %s26, 1
      %p61 = por %p59, %p60
      %p63 = scmp.ne.s32.totalorder %s46, %s62
      %p64 = scmp.eq.s32.totalorder %s26, 0
      %p65 = por %p63, %p64
      %s66 = ssub.s32 %s27, %s39
      %s67 = ssub.s32 %s28, %s35
      %s68 = sor.u32 %s66, %s67
      %p69 = scmp.eq.s32.totalorder %s68, 0
      %s71 = sadd.s32 %s70, 1
      %s72 = scalar_select %p69, %s70, %s71
      %p75 = pneg %p69
      %p76 = scmp.eq.s32.totalorder %s20, 1
      %p77 = por %p75, %p76
      %p78 = scmp.ne.s32.totalorder %s70, %s73
      %p79 = scmp.eq.s32.totalorder %s20, 0
      %p80 = por %p78, %p79
      %p81 = scmp.ne.s32.totalorder %s70, %s73
      %p82 = scmp.eq.s32.totalorder %s25, 1
      %p83 = por %p81, %p82
      %p84 = scmp.ne.s32.totalorder %s73, %s74
      %p85 = scmp.eq.s32.totalorder %s25, 0
      %p86 = por %p84, %p85
      %p87 = scmp.ne.s32.totalorder %s73, %s74
      %p88 = scmp.eq.s32.totalorder %s26, 1
      %p89 = por %p87, %p88
      %p91 = scmp.ne.s32.totalorder %s74, %s90
      %p92 = scmp.eq.s32.totalorder %s26, 0
      %p93 = por %p91, %p92
      %p94 = scmp.le.s32.totalorder 1, %s20
      %p95 = scmp.lt.s32.totalorder %s20, 3
      %p96 = pnand %p94, %p95
      %p97 = pneg %p96
      // Predicated region
      $region9: #{median_pool2d.1} parent=5 // pred_check
        _
      $region10: #{median_pool2d.1} parent=5 // pred_check_branch
        %99 = sbr.rel (%p96) target = $region12
      $region11: #{median_pool2d.1} parent=5 // pred_region
        %s100 = ssub.s32 %s20, 1
        // Predicated region
        $region13: #{median_pool2d.1} parent=11 // pred_check
          %p101 = pneg %p58
        $region14: #{median_pool2d.1} parent=11 // pred_check_branch
          %103 = sbr.rel (%p101) target = $region16
        $region15: #{median_pool2d.1} parent=11 // pred_region
          %s104 = smul.u32 8, %s29
          %106 = vsyncadd [#allocation5], 0
          %s107 = smul.addr %s104, 2
          %s108 = smul.addr %s107, 8
          %s109 = scalar_lea.hbm %s1, %s108
          %s110 = sshll.u32 %s109, 4
          %s111 = int_to_ptr.hbm [resolvable:$true] %s110
          %s112 = sshll.u32 [#allocation4], 4
          %s113 = int_to_ptr.vmem [resolvable:$true] %s112
          %118 = dma.hbm_to_vmem [thread:$0]  %s111, 2048, %s113, [#allocation5], 128, 128, 8
        $region16: #{median_pool2d.1} parent=11 // pred_fallthru
          _
      $region12: #{median_pool2d.1} parent=5 // pred_fallthru
        _
      %p119 = scmp.lt.s32.totalorder %s20, 2
      // Predicated region
      $region17: #{median_pool2d.1} parent=5 // pred_check
        %p120 = pneg %p119
      $region18: #{median_pool2d.1} parent=5 // pred_check_branch
        %122 = sbr.rel (%p120) target = $region20
      $region19: #{median_pool2d.1} parent=5 // pred_region
        _
      $region20: #{median_pool2d.1} parent=5 // pred_fallthru
        _
      %p123 = scmp.le.s32.totalorder 1, %s20
      %p124 = scmp.lt.s32.totalorder %s20, 3
      %p125 = pnand %p123, %p124
      %p126 = pneg %p125
      // Predicated region
      $region21: #{median_pool2d.1} parent=5 // pred_check
        _
      $region22: #{median_pool2d.1} parent=5 // pred_check_branch
        %128 = sbr.rel (%p125) target = $region24
      $region23: #{median_pool2d.1} parent=5 // pred_region
        %s129 = ssub.s32 %s20, 1
        // Predicated region
        $region25: #{median_pool2d.1} parent=23 // pred_check
          %p130 = pneg %p58
        $region26: #{median_pool2d.1} parent=23 // pred_check_branch
          %132 = sbr.rel (%p130) target = $region28
        $region27: #{median_pool2d.1} parent=23 // pred_region
          %134 = dma.done [#allocation5], 2048
        $region28: #{median_pool2d.1} parent=23 // pred_fallthru
          _
        %p135 = pneg %p58
        %p136 = pneg %p55
        %p137 = pneg %p86
        %p138 = pneg %p83
        %s139 = sand.u32 %s73, 1
        %s140 = scalar_lea.sflag [#allocation6], %s139
        %s141 = sand.u32 %s73, 1
        %s142 = smul.addr %s141, 64
        %s143 = scalar_lea.vmem [#allocation7], %s142
        %s144 = smul.u32 8, %s29
        %s145 = smul.u32 8, %s29
        %s146 = smul.u32 %s30, 8
        %s147 = sld [smem:[#allocation3 + %s146]]
        %s148 = scalar_lea.vmem [#allocation4], %s147
        %v149 = vld [vmem:[%s148] sm:$0x1]
        %v150 = vld [vmem:[%s148 + $0x10] sm:$0x1]
        %v151 = vld [vmem:[%s148 + $0x20] sm:$0x1]
        %v152 = vld [vmem:[%s148 + $0x30] sm:$0x1]
        %v153 = vld [vmem:[%s148 + $0x40] sm:$0x1]
        %v154 = vld [vmem:[%s148 + $0x50] sm:$0x1]
        %v155 = vld [vmem:[%s148 + $0x60] sm:$0x1]
        %v156 = vld [vmem:[%s148 + $0x70] sm:$0x1]
        %s157 = sadd.s32 %s146, 1
        %s158 = sld [smem:[#allocation3 + %s157]]
        %s159 = scalar_lea.vmem [#allocation4], %s158
        %v160 = vld [vmem:[%s159] sm:$0x1]
        %v161 = vld [vmem:[%s159 + $0x10] sm:$0x1]
        %v162 = vld [vmem:[%s159 + $0x20] sm:$0x1]
        %v163 = vld [vmem:[%s159 + $0x30] sm:$0x1]
        %v164 = vld [vmem:[%s159 + $0x40] sm:$0x1]
        %v165 = vld [vmem:[%s159 + $0x50] sm:$0x1]
        %v166 = vld [vmem:[%s159 + $0x60] sm:$0x1]
        %v167 = vld [vmem:[%s159 + $0x70] sm:$0x1]
        %s168 = sadd.s32 %s146, 2
        %s169 = sld [smem:[#allocation3 + %s168]]
        %s170 = scalar_lea.vmem [#allocation4], %s169
        %v171 = vld [vmem:[%s170] sm:$0x1]
        %v172 = vld [vmem:[%s170 + $0x10] sm:$0x1]
        %v173 = vld [vmem:[%s170 + $0x20] sm:$0x1]
        %v174 = vld [vmem:[%s170 + $0x30] sm:$0x1]
        %v175 = vld [vmem:[%s170 + $0x40] sm:$0x1]
        %v176 = vld [vmem:[%s170 + $0x50] sm:$0x1]
        %v177 = vld [vmem:[%s170 + $0x60] sm:$0x1]
        %v178 = vld [vmem:[%s170 + $0x70] sm:$0x1]
        %s179 = sadd.s32 %s146, 3
        %s180 = sld [smem:[#allocation3 + %s179]]
        %s181 = scalar_lea.vmem [#allocation4], %s180
        %v182 = vld [vmem:[%s181] sm:$0x1]
        %v183 = vld [vmem:[%s181 + $0x10] sm:$0x1]
        %v184 = vld [vmem:[%s181 + $0x20] sm:$0x1]
        %v185 = vld [vmem:[%s181 + $0x30] sm:$0x1]
        %v186 = vld [vmem:[%s181 + $0x40] sm:$0x1]
        %v187 = vld [vmem:[%s181 + $0x50] sm:$0x1]
        %v188 = vld [vmem:[%s181 + $0x60] sm:$0x1]
        %v189 = vld [vmem:[%s181 + $0x70] sm:$0x1]
        %s190 = sadd.s32 %s146, 4
        %s191 = sld [smem:[#allocation3 + %s190]]
        %s192 = scalar_lea.vmem [#allocation4], %s191
        %v193 = vld [vmem:[%s192] sm:$0x1]
        %v194 = vld [vmem:[%s192 + $0x10] sm:$0x1]
        %v195 = vld [vmem:[%s192 + $0x20] sm:$0x1]
        %v196 = vld [vmem:[%s192 + $0x30] sm:$0x1]
        %v197 = vld [vmem:[%s192 + $0x40] sm:$0x1]
        %v198 = vld [vmem:[%s192 + $0x50] sm:$0x1]
        %v199 = vld [vmem:[%s192 + $0x60] sm:$0x1]
        %v200 = vld [vmem:[%s192 + $0x70] sm:$0x1]
        %s201 = sadd.s32 %s146, 5
        %s202 = sld [smem:[#allocation3 + %s201]]
        %s203 = scalar_lea.vmem [#allocation4], %s202
        %v204 = vld [vmem:[%s203] sm:$0x1]
        %v205 = vld [vmem:[%s203 + $0x10] sm:$0x1]
        %v206 = vld [vmem:[%s203 + $0x20] sm:$0x1]
        %v207 = vld [vmem:[%s203 + $0x30] sm:$0x1]
        %v208 = vld [vmem:[%s203 + $0x40] sm:$0x1]
        %v209 = vld [vmem:[%s203 + $0x50] sm:$0x1]
        %v210 = vld [vmem:[%s203 + $0x60] sm:$0x1]
        %v211 = vld [vmem:[%s203 + $0x70] sm:$0x1]
        %s212 = sadd.s32 %s146, 6
        %s213 = sld [smem:[#allocation3 + %s212]]
        %s214 = scalar_lea.vmem [#allocation4], %s213
        %v215 = vld [vmem:[%s214] sm:$0x1]
        %v216 = vld [vmem:[%s214 + $0x10] sm:$0x1]
        %v217 = vld [vmem:[%s214 + $0x20] sm:$0x1]
        %v218 = vld [vmem:[%s214 + $0x30] sm:$0x1]
        %v219 = vld [vmem:[%s214 + $0x40] sm:$0x1]
        %v220 = vld [vmem:[%s214 + $0x50] sm:$0x1]
        %v221 = vld [vmem:[%s214 + $0x60] sm:$0x1]
        %v222 = vld [vmem:[%s214 + $0x70] sm:$0x1]
        %s223 = sadd.s32 %s146, 7
        %s224 = sld [smem:[#allocation3 + %s223]]
        %s225 = scalar_lea.vmem [#allocation4], %s224
        %v226 = vld [vmem:[%s225] sm:$0x1]
        %v227 = vld [vmem:[%s225 + $0x10] sm:$0x1]
        %v228 = vld [vmem:[%s225 + $0x20] sm:$0x1]
        %v229 = vld [vmem:[%s225 + $0x30] sm:$0x1]
        %v230 = vld [vmem:[%s225 + $0x40] sm:$0x1]
        %v231 = vld [vmem:[%s225 + $0x50] sm:$0x1]
        %v232 = vld [vmem:[%s225 + $0x60] sm:$0x1]
        %v233 = vld [vmem:[%s225 + $0x70] sm:$0x1]
        %s234 = sadd.s32 %s146, 8
        %s235 = sld [smem:[#allocation3 + %s234]]
        %s236 = scalar_lea.vmem [#allocation4], %s235
        %v237 = vld [vmem:[%s236] sm:$0x1]
        %v238 = vld [vmem:[%s236 + $0x10] sm:$0x1]
        %v239 = vld [vmem:[%s236 + $0x20] sm:$0x1]
        %v240 = vld [vmem:[%s236 + $0x30] sm:$0x1]
        %v241 = vld [vmem:[%s236 + $0x40] sm:$0x1]
        %v242 = vld [vmem:[%s236 + $0x50] sm:$0x1]
        %v243 = vld [vmem:[%s236 + $0x60] sm:$0x1]
        %v244 = vld [vmem:[%s236 + $0x70] sm:$0x1]
        %s245 = sadd.s32 %s146, 9
        %s246 = sld [smem:[#allocation3 + %s245]]
        %s247 = scalar_lea.vmem [#allocation4], %s246
        %v248 = vld [vmem:[%s247] sm:$0x1]
        %v249 = vld [vmem:[%s247 + $0x10] sm:$0x1]
        %v250 = vld [vmem:[%s247 + $0x20] sm:$0x1]
        %v251 = vld [vmem:[%s247 + $0x30] sm:$0x1]
        %v252 = vld [vmem:[%s247 + $0x40] sm:$0x1]
        %v253 = vld [vmem:[%s247 + $0x50] sm:$0x1]
        %v254 = vld [vmem:[%s247 + $0x60] sm:$0x1]
        %v255 = vld [vmem:[%s247 + $0x70] sm:$0x1]
        %v264 = vrot.slane %v160, 7
        %v265 = vrot.slane %v161, 7
        %v266 = vrot.slane %v162, 7
        %v267 = vrot.slane %v163, 7
        %v268 = vrot.slane %v164, 7
        %v269 = vrot.slane %v165, 7
        %v270 = vrot.slane %v166, 7
        %v271 = vrot.slane %v167, 7
        %v288 = vrot.slane %v171, 6
        %v289 = vrot.slane %v172, 6
        %v290 = vrot.slane %v173, 6
        %v291 = vrot.slane %v174, 6
        %v292 = vrot.slane %v175, 6
        %v293 = vrot.slane %v176, 6
        %v294 = vrot.slane %v177, 6
        %v295 = vrot.slane %v178, 6
        %v312 = vrot.slane %v182, 5
        %v313 = vrot.slane %v183, 5
        %v314 = vrot.slane %v184, 5
        %v315 = vrot.slane %v185, 5
        %v316 = vrot.slane %v186, 5
        %v317 = vrot.slane %v187, 5
        %v318 = vrot.slane %v188, 5
        %v319 = vrot.slane %v189, 5
        %v336 = vrot.slane %v193, 4
        %v337 = vrot.slane %v194, 4
        %v338 = vrot.slane %v195, 4
        %v339 = vrot.slane %v196, 4
        %v340 = vrot.slane %v197, 4
        %v341 = vrot.slane %v198, 4
        %v342 = vrot.slane %v199, 4
        %v343 = vrot.slane %v200, 4
        %v360 = vrot.slane %v204, 3
        %v361 = vrot.slane %v205, 3
        %v362 = vrot.slane %v206, 3
        %v363 = vrot.slane %v207, 3
        %v364 = vrot.slane %v208, 3
        %v365 = vrot.slane %v209, 3
        %v366 = vrot.slane %v210, 3
        %v367 = vrot.slane %v211, 3
        %v384 = vrot.slane %v215, 2
        %v385 = vrot.slane %v216, 2
        %v386 = vrot.slane %v217, 2
        %v387 = vrot.slane %v218, 2
        %v388 = vrot.slane %v219, 2
        %v389 = vrot.slane %v220, 2
        %v390 = vrot.slane %v221, 2
        %v391 = vrot.slane %v222, 2
        %v408 = vrot.slane %v226, 1
        %v409 = vrot.slane %v227, 1
        %v410 = vrot.slane %v228, 1
        %v411 = vrot.slane %v229, 1
        %v412 = vrot.slane %v230, 1
        %v413 = vrot.slane %v231, 1
        %v414 = vrot.slane %v232, 1
        %v415 = vrot.slane %v233, 1
        %v432 = vrot.slane %v248, 7
        %v433 = vrot.slane %v249, 7
        %v434 = vrot.slane %v250, 7
        %v435 = vrot.slane %v251, 7
        %v436 = vrot.slane %v252, 7
        %v437 = vrot.slane %v253, 7
        %v438 = vrot.slane %v254, 7
        %v439 = vrot.slane %v255, 7
        %vm448 = vcmask 1040384
        %v449 = vsel %vm448, %v149, %v264
        %v450 = vsel %vm448, %v150, %v265
        %v451 = vsel %vm448, %v151, %v266
        %v452 = vsel %vm448, %v152, %v267
        %v453 = vsel %vm448, %v153, %v268
        %v454 = vsel %vm448, %v154, %v269
        %v455 = vsel %vm448, %v155, %v270
        %v456 = vsel %vm448, %v156, %v271
        %vm457 = vcmask 1041408
        %v458 = vsel %vm457, %v449, %v288
        %v459 = vsel %vm457, %v450, %v289
        %v460 = vsel %vm457, %v451, %v290
        %v461 = vsel %vm457, %v452, %v291
        %v462 = vsel %vm457, %v453, %v292
        %v463 = vsel %vm457, %v454, %v293
        %v464 = vsel %vm457, %v455, %v294
        %v465 = vsel %vm457, %v456, %v295
        %vm466 = vcmask 1042432
        %v467 = vsel %vm466, %v458, %v312
        %v468 = vsel %vm466, %v459, %v313
        %v469 = vsel %vm466, %v460, %v314
        %v470 = vsel %vm466, %v461, %v315
        %v471 = vsel %vm466, %v462, %v316
        %v472 = vsel %vm466, %v463, %v317
        %v473 = vsel %vm466, %v464, %v318
        %v474 = vsel %vm466, %v465, %v319
        %vm475 = vcmask 1043456
        %v476 = vsel %vm475, %v467, %v336
        %v477 = vsel %vm475, %v468, %v337
        %v478 = vsel %vm475, %v469, %v338
        %v479 = vsel %vm475, %v470, %v339
        %v480 = vsel %vm475, %v471, %v340
        %v481 = vsel %vm475, %v472, %v341
        %v482 = vsel %vm475, %v473, %v342
        %v483 = vsel %vm475, %v474, %v343
        %vm484 = vcmask 1044480
        %v485 = vsel %vm484, %v476, %v360
        %v486 = vsel %vm484, %v477, %v361
        %v487 = vsel %vm484, %v478, %v362
        %v488 = vsel %vm484, %v479, %v363
        %v489 = vsel %vm484, %v480, %v364
        %v490 = vsel %vm484, %v481, %v365
        %v491 = vsel %vm484, %v482, %v366
        %v492 = vsel %vm484, %v483, %v367
        %vm493 = vcmask 1045504
        %v494 = vsel %vm493, %v485, %v384
        %v495 = vsel %vm493, %v486, %v385
        %v496 = vsel %vm493, %v487, %v386
        %v497 = vsel %vm493, %v488, %v387
        %v498 = vsel %vm493, %v489, %v388
        %v499 = vsel %vm493, %v490, %v389
        %v500 = vsel %vm493, %v491, %v390
        %v501 = vsel %vm493, %v492, %v391
        %vm502 = vcmask 1046528
        %v503 = vsel %vm502, %v494, %v408
        %v504 = vsel %vm502, %v495, %v409
        %v505 = vsel %vm502, %v496, %v410
        %v506 = vsel %vm502, %v497, %v411
        %v507 = vsel %vm502, %v498, %v412
        %v508 = vsel %vm502, %v499, %v413
        %v509 = vsel %vm502, %v500, %v414
        %v510 = vsel %vm502, %v501, %v415
        %v511 = vsel %vm448, %v237, %v432
        %v512 = vsel %vm448, %v238, %v433
        %v513 = vsel %vm448, %v239, %v434
        %v514 = vsel %vm448, %v240, %v435
        %v515 = vsel %vm448, %v241, %v436
        %v516 = vsel %vm448, %v242, %v437
        %v517 = vsel %vm448, %v243, %v438
        %v518 = vsel %vm448, %v244, %v439
        %535 = vrot.lane.b32.xlu0 %v503, 127
        %v536 = vpop.permute.xlu0 %535
        %537 = vrot.lane.b32.xlu0 %v511, 127
        %v538 = vpop.permute.xlu0 %537
        %539 = vrot.lane.b32.xlu0 %v504, 127
        %v540 = vpop.permute.xlu0 %539
        %541 = vrot.lane.b32.xlu0 %v512, 127
        %v542 = vpop.permute.xlu0 %541
        %543 = vrot.lane.b32.xlu0 %v505, 127
        %v544 = vpop.permute.xlu0 %543
        %545 = vrot.lane.b32.xlu0 %v513, 127
        %v546 = vpop.permute.xlu0 %545
        %547 = vrot.lane.b32.xlu0 %v506, 127
        %v548 = vpop.permute.xlu0 %547
        %549 = vrot.lane.b32.xlu0 %v514, 127
        %v550 = vpop.permute.xlu0 %549
        %551 = vrot.lane.b32.xlu0 %v507, 127
        %v552 = vpop.permute.xlu0 %551
        %553 = vrot.lane.b32.xlu0 %v515, 127
        %v554 = vpop.permute.xlu0 %553
        %555 = vrot.lane.b32.xlu0 %v508, 127
        %v556 = vpop.permute.xlu0 %555
        %557 = vrot.lane.b32.xlu0 %v516, 127
        %v558 = vpop.permute.xlu0 %557
        %559 = vrot.lane.b32.xlu0 %v509, 127
        %v560 = vpop.permute.xlu0 %559
        %561 = vrot.lane.b32.xlu0 %v517, 127
        %v562 = vpop.permute.xlu0 %561
        %563 = vrot.lane.b32.xlu0 %v510, 127
        %v564 = vpop.permute.xlu0 %563
        %565 = vrot.lane.b32.xlu0 %v518, 127
        %v566 = vpop.permute.xlu0 %565
        %583 = vrot.lane.b32.xlu0 %v503, 1
        %v584 = vpop.permute.xlu0 %583
        %585 = vrot.lane.b32.xlu0 %v511, 1
        %v586 = vpop.permute.xlu0 %585
        %587 = vrot.lane.b32.xlu0 %v504, 1
        %v588 = vpop.permute.xlu0 %587
        %589 = vrot.lane.b32.xlu0 %v512, 1
        %v590 = vpop.permute.xlu0 %589
        %591 = vrot.lane.b32.xlu0 %v505, 1
        %v592 = vpop.permute.xlu0 %591
        %593 = vrot.lane.b32.xlu0 %v513, 1
        %v594 = vpop.permute.xlu0 %593
        %595 = vrot.lane.b32.xlu0 %v506, 1
        %v596 = vpop.permute.xlu0 %595
        %597 = vrot.lane.b32.xlu0 %v514, 1
        %v598 = vpop.permute.xlu0 %597
        %599 = vrot.lane.b32.xlu0 %v507, 1
        %v600 = vpop.permute.xlu0 %599
        %601 = vrot.lane.b32.xlu0 %v515, 1
        %v602 = vpop.permute.xlu0 %601
        %603 = vrot.lane.b32.xlu0 %v508, 1
        %v604 = vpop.permute.xlu0 %603
        %605 = vrot.lane.b32.xlu0 %v516, 1
        %v606 = vpop.permute.xlu0 %605
        %607 = vrot.lane.b32.xlu0 %v509, 1
        %v608 = vpop.permute.xlu0 %607
        %609 = vrot.lane.b32.xlu0 %v517, 1
        %v610 = vpop.permute.xlu0 %609
        %611 = vrot.lane.b32.xlu0 %v510, 1
        %v612 = vpop.permute.xlu0 %611
        %613 = vrot.lane.b32.xlu0 %v518, 1
        %v614 = vpop.permute.xlu0 %613
        %631 = vrot.lane.b32.xlu0 %v503, 3
        %v632 = vpop.permute.xlu0 %631
        %633 = vrot.lane.b32.xlu0 %v511, 3
        %v634 = vpop.permute.xlu0 %633
        %635 = vrot.lane.b32.xlu0 %v504, 3
        %v636 = vpop.permute.xlu0 %635
        %637 = vrot.lane.b32.xlu0 %v512, 3
        %v638 = vpop.permute.xlu0 %637
        %639 = vrot.lane.b32.xlu0 %v505, 3
        %v640 = vpop.permute.xlu0 %639
        %641 = vrot.lane.b32.xlu0 %v513, 3
        %v642 = vpop.permute.xlu0 %641
        %643 = vrot.lane.b32.xlu0 %v506, 3
        %v644 = vpop.permute.xlu0 %643
        %645 = vrot.lane.b32.xlu0 %v514, 3
        %v646 = vpop.permute.xlu0 %645
        %647 = vrot.lane.b32.xlu0 %v507, 3
        %v648 = vpop.permute.xlu0 %647
        %649 = vrot.lane.b32.xlu0 %v515, 3
        %v650 = vpop.permute.xlu0 %649
        %651 = vrot.lane.b32.xlu0 %v508, 3
        %v652 = vpop.permute.xlu0 %651
        %653 = vrot.lane.b32.xlu0 %v516, 3
        %v654 = vpop.permute.xlu0 %653
        %655 = vrot.lane.b32.xlu0 %v509, 3
        %v656 = vpop.permute.xlu0 %655
        %657 = vrot.lane.b32.xlu0 %v517, 3
        %v658 = vpop.permute.xlu0 %657
        %659 = vrot.lane.b32.xlu0 %v510, 3
        %v660 = vpop.permute.xlu0 %659
        %661 = vrot.lane.b32.xlu0 %v518, 3
        %v662 = vpop.permute.xlu0 %661
        %vm679 = vcmask 7168
        %v680 = vsel %vm679, %v536, %v584
        %v681 = vsel %vm679, %v538, %v586
        %v682 = vsel %vm679, %v540, %v588
        %v683 = vsel %vm679, %v542, %v590
        %v684 = vsel %vm679, %v544, %v592
        %v685 = vsel %vm679, %v546, %v594
        %v686 = vsel %vm679, %v548, %v596
        %v687 = vsel %vm679, %v550, %v598
        %v688 = vsel %vm679, %v552, %v600
        %v689 = vsel %vm679, %v554, %v602
        %v690 = vsel %vm679, %v556, %v604
        %v691 = vsel %vm679, %v558, %v606
        %v692 = vsel %vm679, %v560, %v608
        %v693 = vsel %vm679, %v562, %v610
        %v694 = vsel %vm679, %v564, %v612
        %v695 = vsel %vm679, %v566, %v614
        %vm696 = vcmask 138240
        %v697 = vsel %vm696, %v680, %v632
        %v698 = vsel %vm696, %v681, %v634
        %v699 = vsel %vm696, %v682, %v636
        %v700 = vsel %vm696, %v683, %v638
        %v701 = vsel %vm696, %v684, %v640
        %v702 = vsel %vm696, %v685, %v642
        %v703 = vsel %vm696, %v686, %v644
        %v704 = vsel %vm696, %v687, %v646
        %v705 = vsel %vm696, %v688, %v648
        %v706 = vsel %vm696, %v689, %v650
        %v707 = vsel %vm696, %v690, %v652
        %v708 = vsel %vm696, %v691, %v654
        %v709 = vsel %vm696, %v692, %v656
        %v710 = vsel %vm696, %v693, %v658
        %v711 = vsel %vm696, %v694, %v660
        %v712 = vsel %vm696, %v695, %v662
        %721 = vrot.lane.b32.xlu0 %v697, 127
        %v722 = vpop.permute.xlu0 %721
        %723 = vrot.lane.b32.xlu0 %v699, 127
        %v724 = vpop.permute.xlu0 %723
        %725 = vrot.lane.b32.xlu0 %v701, 127
        %v726 = vpop.permute.xlu0 %725
        %727 = vrot.lane.b32.xlu0 %v703, 127
        %v728 = vpop.permute.xlu0 %727
        %729 = vrot.lane.b32.xlu0 %v705, 127
        %v730 = vpop.permute.xlu0 %729
        %731 = vrot.lane.b32.xlu0 %v707, 127
        %v732 = vpop.permute.xlu0 %731
        %733 = vrot.lane.b32.xlu0 %v709, 127
        %v734 = vpop.permute.xlu0 %733
        %735 = vrot.lane.b32.xlu0 %v711, 127
        %v736 = vpop.permute.xlu0 %735
        %v745 = vmin.f32 %v697, %v722
        %v746 = vmin.f32 %v699, %v724
        %v747 = vmin.f32 %v701, %v726
        %v748 = vmin.f32 %v703, %v728
        %v749 = vmin.f32 %v705, %v730
        %v750 = vmin.f32 %v707, %v732
        %v751 = vmin.f32 %v709, %v734
        %v752 = vmin.f32 %v711, %v736
        %v753 = vmax.f32 %v697, %v722
        %v754 = vmax.f32 %v699, %v724
        %v755 = vmax.f32 %v701, %v726
        %v756 = vmax.f32 %v703, %v728
        %v757 = vmax.f32 %v705, %v730
        %v758 = vmax.f32 %v707, %v732
        %v759 = vmax.f32 %v709, %v734
        %v760 = vmax.f32 %v711, %v736
        %769 = vrot.lane.b32.xlu0 %v698, 127
        %v770 = vpop.permute.xlu0 %769
        %771 = vrot.lane.b32.xlu0 %v700, 127
        %v772 = vpop.permute.xlu0 %771
        %773 = vrot.lane.b32.xlu0 %v702, 127
        %v774 = vpop.permute.xlu0 %773
        %775 = vrot.lane.b32.xlu0 %v704, 127
        %v776 = vpop.permute.xlu0 %775
        %777 = vrot.lane.b32.xlu0 %v706, 127
        %v778 = vpop.permute.xlu0 %777
        %779 = vrot.lane.b32.xlu0 %v708, 127
        %v780 = vpop.permute.xlu0 %779
        %781 = vrot.lane.b32.xlu0 %v710, 127
        %v782 = vpop.permute.xlu0 %781
        %783 = vrot.lane.b32.xlu0 %v712, 127
        %v784 = vpop.permute.xlu0 %783
        %v793 = vmin.f32 %v698, %v770
        %v794 = vmin.f32 %v700, %v772
        %v795 = vmin.f32 %v702, %v774
        %v796 = vmin.f32 %v704, %v776
        %v797 = vmin.f32 %v706, %v778
        %v798 = vmin.f32 %v708, %v780
        %v799 = vmin.f32 %v710, %v782
        %v800 = vmin.f32 %v712, %v784
        %v801 = vmax.f32 %v698, %v770
        %v802 = vmax.f32 %v700, %v772
        %v803 = vmax.f32 %v702, %v774
        %v804 = vmax.f32 %v704, %v776
        %v805 = vmax.f32 %v706, %v778
        %v806 = vmax.f32 %v708, %v780
        %v807 = vmax.f32 %v710, %v782
        %v808 = vmax.f32 %v712, %v784
        %817 = vrot.lane.b32.xlu0 %v745, 127
        %v818 = vpop.permute.xlu0 %817
        %819 = vrot.lane.b32.xlu0 %v746, 127
        %v820 = vpop.permute.xlu0 %819
        %821 = vrot.lane.b32.xlu0 %v747, 127
        %v822 = vpop.permute.xlu0 %821
        %823 = vrot.lane.b32.xlu0 %v748, 127
        %v824 = vpop.permute.xlu0 %823
        %825 = vrot.lane.b32.xlu0 %v749, 127
        %v826 = vpop.permute.xlu0 %825
        %827 = vrot.lane.b32.xlu0 %v750, 127
        %v828 = vpop.permute.xlu0 %827
        %829 = vrot.lane.b32.xlu0 %v751, 127
        %v830 = vpop.permute.xlu0 %829
        %831 = vrot.lane.b32.xlu0 %v752, 127
        %v832 = vpop.permute.xlu0 %831
        %v841 = vmin.f32 %v697, %v818
        %v842 = vmin.f32 %v699, %v820
        %v843 = vmin.f32 %v701, %v822
        %v844 = vmin.f32 %v703, %v824
        %v845 = vmin.f32 %v705, %v826
        %v846 = vmin.f32 %v707, %v828
        %v847 = vmin.f32 %v709, %v830
        %v848 = vmin.f32 %v711, %v832
        %v849 = vmax.f32 %v697, %v818
        %v850 = vmax.f32 %v699, %v820
        %v851 = vmax.f32 %v701, %v822
        %v852 = vmax.f32 %v703, %v824
        %v853 = vmax.f32 %v705, %v826
        %v854 = vmax.f32 %v707, %v828
        %v855 = vmax.f32 %v709, %v830
        %v856 = vmax.f32 %v711, %v832
        %865 = vrot.lane.b32.xlu0 %v793, 127
        %v866 = vpop.permute.xlu0 %865
        %867 = vrot.lane.b32.xlu0 %v794, 127
        %v868 = vpop.permute.xlu0 %867
        %869 = vrot.lane.b32.xlu0 %v795, 127
        %v870 = vpop.permute.xlu0 %869
        %871 = vrot.lane.b32.xlu0 %v796, 127
        %v872 = vpop.permute.xlu0 %871
        %873 = vrot.lane.b32.xlu0 %v797, 127
        %v874 = vpop.permute.xlu0 %873
        %875 = vrot.lane.b32.xlu0 %v798, 127
        %v876 = vpop.permute.xlu0 %875
        %877 = vrot.lane.b32.xlu0 %v799, 127
        %v878 = vpop.permute.xlu0 %877
        %879 = vrot.lane.b32.xlu0 %v800, 127
        %v880 = vpop.permute.xlu0 %879
        %v889 = vmin.f32 %v698, %v866
        %v890 = vmin.f32 %v700, %v868
        %v891 = vmin.f32 %v702, %v870
        %v892 = vmin.f32 %v704, %v872
        %v893 = vmin.f32 %v706, %v874
        %v894 = vmin.f32 %v708, %v876
        %v895 = vmin.f32 %v710, %v878
        %v896 = vmin.f32 %v712, %v880
        %v897 = vmax.f32 %v698, %v866
        %v898 = vmax.f32 %v700, %v868
        %v899 = vmax.f32 %v702, %v870
        %v900 = vmax.f32 %v704, %v872
        %v901 = vmax.f32 %v706, %v874
        %v902 = vmax.f32 %v708, %v876
        %v903 = vmax.f32 %v710, %v878
        %v904 = vmax.f32 %v712, %v880
        %913 = vrot.lane.b32.xlu0 %v753, 127
        %v914 = vpop.permute.xlu0 %913
        %915 = vrot.lane.b32.xlu0 %v754, 127
        %v916 = vpop.permute.xlu0 %915
        %917 = vrot.lane.b32.xlu0 %v755, 127
        %v918 = vpop.permute.xlu0 %917
        %919 = vrot.lane.b32.xlu0 %v756, 127
        %v920 = vpop.permute.xlu0 %919
        %921 = vrot.lane.b32.xlu0 %v757, 127
        %v922 = vpop.permute.xlu0 %921
        %923 = vrot.lane.b32.xlu0 %v758, 127
        %v924 = vpop.permute.xlu0 %923
        %925 = vrot.lane.b32.xlu0 %v759, 127
        %v926 = vpop.permute.xlu0 %925
        %927 = vrot.lane.b32.xlu0 %v760, 127
        %v928 = vpop.permute.xlu0 %927
        %v937 = vmin.f32 %v849, %v914
        %v938 = vmin.f32 %v850, %v916
        %v939 = vmin.f32 %v851, %v918
        %v940 = vmin.f32 %v852, %v920
        %v941 = vmin.f32 %v853, %v922
        %v942 = vmin.f32 %v854, %v924
        %v943 = vmin.f32 %v855, %v926
        %v944 = vmin.f32 %v856, %v928
        %v945 = vmax.f32 %v849, %v914
        %v946 = vmax.f32 %v850, %v916
        %v947 = vmax.f32 %v851, %v918
        %v948 = vmax.f32 %v852, %v920
        %v949 = vmax.f32 %v853, %v922
        %v950 = vmax.f32 %v854, %v924
        %v951 = vmax.f32 %v855, %v926
        %v952 = vmax.f32 %v856, %v928
        %961 = vrot.lane.b32.xlu0 %v801, 127
        %v962 = vpop.permute.xlu0 %961
        %963 = vrot.lane.b32.xlu0 %v802, 127
        %v964 = vpop.permute.xlu0 %963
        %965 = vrot.lane.b32.xlu0 %v803, 127
        %v966 = vpop.permute.xlu0 %965
        %967 = vrot.lane.b32.xlu0 %v804, 127
        %v968 = vpop.permute.xlu0 %967
        %969 = vrot.lane.b32.xlu0 %v805, 127
        %v970 = vpop.permute.xlu0 %969
        %971 = vrot.lane.b32.xlu0 %v806, 127
        %v972 = vpop.permute.xlu0 %971
        %973 = vrot.lane.b32.xlu0 %v807, 127
        %v974 = vpop.permute.xlu0 %973
        %975 = vrot.lane.b32.xlu0 %v808, 127
        %v976 = vpop.permute.xlu0 %975
        %v985 = vmin.f32 %v897, %v962
        %v986 = vmin.f32 %v898, %v964
        %v987 = vmin.f32 %v899, %v966
        %v988 = vmin.f32 %v900, %v968
        %v989 = vmin.f32 %v901, %v970
        %v990 = vmin.f32 %v902, %v972
        %v991 = vmin.f32 %v903, %v974
        %v992 = vmin.f32 %v904, %v976
        %v993 = vmax.f32 %v897, %v962
        %v994 = vmax.f32 %v898, %v964
        %v995 = vmax.f32 %v899, %v966
        %v996 = vmax.f32 %v900, %v968
        %v997 = vmax.f32 %v901, %v970
        %v998 = vmax.f32 %v902, %v972
        %v999 = vmax.f32 %v903, %v974
        %v1000 = vmax.f32 %v904, %v976
        %v1017 = vrot.slane %v841, 1
        %v1018 = vrot.slane %v889, 1
        %v1019 = vsel %vm502, %v1017, %v1018
        %v1020 = vrot.slane %v842, 1
        %v1021 = vrot.slane %v890, 1
        %v1022 = vsel %vm502, %v1020, %v1021
        %v1023 = vrot.slane %v843, 1
        %v1024 = vrot.slane %v891, 1
        %v1025 = vsel %vm502, %v1023, %v1024
        %v1026 = vrot.slane %v844, 1
        %v1027 = vrot.slane %v892, 1
        %v1028 = vsel %vm502, %v1026, %v1027
        %v1029 = vrot.slane %v845, 1
        %v1030 = vrot.slane %v893, 1
        %v1031 = vsel %vm502, %v1029, %v1030
        %v1032 = vrot.slane %v846, 1
        %v1033 = vrot.slane %v894, 1
        %v1034 = vsel %vm502, %v1032, %v1033
        %v1035 = vrot.slane %v847, 1
        %v1036 = vrot.slane %v895, 1
        %v1037 = vsel %vm502, %v1035, %v1036
        %v1038 = vrot.slane %v848, 1
        %v1039 = vrot.slane %v896, 1
        %v1040 = vsel %vm502, %v1038, %v1039
        %v1049 = vmax.f32 %v841, %v1019
        %v1050 = vmax.f32 %v842, %v1022
        %v1051 = vmax.f32 %v843, %v1025
        %v1052 = vmax.f32 %v844, %v1028
        %v1053 = vmax.f32 %v845, %v1031
        %v1054 = vmax.f32 %v846, %v1034
        %v1055 = vmax.f32 %v847, %v1037
        %v1056 = vmax.f32 %v848, %v1040
        %v1073 = vrot.slane %v945, 1
        %v1074 = vrot.slane %v993, 1
        %v1075 = vsel %vm502, %v1073, %v1074
        %v1076 = vrot.slane %v946, 1
        %v1077 = vrot.slane %v994, 1
        %v1078 = vsel %vm502, %v1076, %v1077
        %v1079 = vrot.slane %v947, 1
        %v1080 = vrot.slane %v995, 1
        %v1081 = vsel %vm502, %v1079, %v1080
        %v1082 = vrot.slane %v948, 1
        %v1083 = vrot.slane %v996, 1
        %v1084 = vsel %vm502, %v1082, %v1083
        %v1085 = vrot.slane %v949, 1
        %v1086 = vrot.slane %v997, 1
        %v1087 = vsel %vm502, %v1085, %v1086
        %v1088 = vrot.slane %v950, 1
        %v1089 = vrot.slane %v998, 1
        %v1090 = vsel %vm502, %v1088, %v1089
        %v1091 = vrot.slane %v951, 1
        %v1092 = vrot.slane %v999, 1
        %v1093 = vsel %vm502, %v1091, %v1092
        %v1094 = vrot.slane %v952, 1
        %v1095 = vrot.slane %v1000, 1
        %v1096 = vsel %vm502, %v1094, %v1095
        %v1113 = vmin.f32 %v945, %v1075
        %v1114 = vmin.f32 %v993, %v1074
        %v1115 = vmin.f32 %v946, %v1078
        %v1116 = vmin.f32 %v994, %v1077
        %v1117 = vmin.f32 %v947, %v1081
        %v1118 = vmin.f32 %v995, %v1080
        %v1119 = vmin.f32 %v948, %v1084
        %v1120 = vmin.f32 %v996, %v1083
        %v1121 = vmin.f32 %v949, %v1087
        %v1122 = vmin.f32 %v997, %v1086
        %v1123 = vmin.f32 %v950, %v1090
        %v1124 = vmin.f32 %v998, %v1089
        %v1125 = vmin.f32 %v951, %v1093
        %v1126 = vmin.f32 %v999, %v1092
        %v1127 = vmin.f32 %v952, %v1096
        %v1128 = vmin.f32 %v1000, %v1095
        %v1145 = vrot.slane %v937, 1
        %v1146 = vrot.slane %v985, 1
        %v1147 = vsel %vm502, %v1145, %v1146
        %v1148 = vrot.slane %v938, 1
        %v1149 = vrot.slane %v986, 1
        %v1150 = vsel %vm502, %v1148, %v1149
        %v1151 = vrot.slane %v939, 1
        %v1152 = vrot.slane %v987, 1
        %v1153 = vsel %vm502, %v1151, %v1152
        %v1154 = vrot.slane %v940, 1
        %v1155 = vrot.slane %v988, 1
        %v1156 = vsel %vm502, %v1154, %v1155
        %v1157 = vrot.slane %v941, 1
        %v1158 = vrot.slane %v989, 1
        %v1159 = vsel %vm502, %v1157, %v1158
        %v1160 = vrot.slane %v942, 1
        %v1161 = vrot.slane %v990, 1
        %v1162 = vsel %vm502, %v1160, %v1161
        %v1163 = vrot.slane %v943, 1
        %v1164 = vrot.slane %v991, 1
        %v1165 = vsel %vm502, %v1163, %v1164
        %v1166 = vrot.slane %v944, 1
        %v1167 = vrot.slane %v992, 1
        %v1168 = vsel %vm502, %v1166, %v1167
        %v1185 = vmin.f32 %v937, %v1147
        %v1186 = vmin.f32 %v985, %v1146
        %v1187 = vmin.f32 %v938, %v1150
        %v1188 = vmin.f32 %v986, %v1149
        %v1189 = vmin.f32 %v939, %v1153
        %v1190 = vmin.f32 %v987, %v1152
        %v1191 = vmin.f32 %v940, %v1156
        %v1192 = vmin.f32 %v988, %v1155
        %v1193 = vmin.f32 %v941, %v1159
        %v1194 = vmin.f32 %v989, %v1158
        %v1195 = vmin.f32 %v942, %v1162
        %v1196 = vmin.f32 %v990, %v1161
        %v1197 = vmin.f32 %v943, %v1165
        %v1198 = vmin.f32 %v991, %v1164
        %v1199 = vmin.f32 %v944, %v1168
        %v1200 = vmin.f32 %v992, %v1167
        %v1201 = vmax.f32 %v937, %v1147
        %v1202 = vmax.f32 %v985, %v1146
        %v1203 = vmax.f32 %v938, %v1150
        %v1204 = vmax.f32 %v986, %v1149
        %v1205 = vmax.f32 %v939, %v1153
        %v1206 = vmax.f32 %v987, %v1152
        %v1207 = vmax.f32 %v940, %v1156
        %v1208 = vmax.f32 %v988, %v1155
        %v1209 = vmax.f32 %v941, %v1159
        %v1210 = vmax.f32 %v989, %v1158
        %v1211 = vmax.f32 %v942, %v1162
        %v1212 = vmax.f32 %v990, %v1161
        %v1213 = vmax.f32 %v943, %v1165
        %v1214 = vmax.f32 %v991, %v1164
        %v1215 = vmax.f32 %v944, %v1168
        %v1216 = vmax.f32 %v992, %v1167
        %v1217 = vrot.slane %v841, 2
        %v1218 = vrot.slane %v889, 2
        %v1219 = vsel %vm493, %v1217, %v1218
        %v1220 = vrot.slane %v842, 2
        %v1221 = vrot.slane %v890, 2
        %v1222 = vsel %vm493, %v1220, %v1221
        %v1223 = vrot.slane %v843, 2
        %v1224 = vrot.slane %v891, 2
        %v1225 = vsel %vm493, %v1223, %v1224
        %v1226 = vrot.slane %v844, 2
        %v1227 = vrot.slane %v892, 2
        %v1228 = vsel %vm493, %v1226, %v1227
        %v1229 = vrot.slane %v845, 2
        %v1230 = vrot.slane %v893, 2
        %v1231 = vsel %vm493, %v1229, %v1230
        %v1232 = vrot.slane %v846, 2
        %v1233 = vrot.slane %v894, 2
        %v1234 = vsel %vm493, %v1232, %v1233
        %v1235 = vrot.slane %v847, 2
        %v1236 = vrot.slane %v895, 2
        %v1237 = vsel %vm493, %v1235, %v1236
        %v1238 = vrot.slane %v848, 2
        %v1239 = vrot.slane %v896, 2
        %v1240 = vsel %vm493, %v1238, %v1239
        %v1249 = vmax.f32 %v1049, %v1219
        %v1250 = vmax.f32 %v1050, %v1222
        %v1251 = vmax.f32 %v1051, %v1225
        %v1252 = vmax.f32 %v1052, %v1228
        %v1253 = vmax.f32 %v1053, %v1231
        %v1254 = vmax.f32 %v1054, %v1234
        %v1255 = vmax.f32 %v1055, %v1237
        %v1256 = vmax.f32 %v1056, %v1240
        %v1273 = vrot.slane %v1185, 1
        %v1274 = vrot.slane %v1186, 1
        %v1275 = vsel %vm502, %v1273, %v1274
        %v1276 = vrot.slane %v1187, 1
        %v1277 = vrot.slane %v1188, 1
        %v1278 = vsel %vm502, %v1276, %v1277
        %v1279 = vrot.slane %v1189, 1
        %v1280 = vrot.slane %v1190, 1
        %v1281 = vsel %vm502, %v1279, %v1280
        %v1282 = vrot.slane %v1191, 1
        %v1283 = vrot.slane %v1192, 1
        %v1284 = vsel %vm502, %v1282, %v1283
        %v1285 = vrot.slane %v1193, 1
        %v1286 = vrot.slane %v1194, 1
        %v1287 = vsel %vm502, %v1285, %v1286
        %v1288 = vrot.slane %v1195, 1
        %v1289 = vrot.slane %v1196, 1
        %v1290 = vsel %vm502, %v1288, %v1289
        %v1291 = vrot.slane %v1197, 1
        %v1292 = vrot.slane %v1198, 1
        %v1293 = vsel %vm502, %v1291, %v1292
        %v1294 = vrot.slane %v1199, 1
        %v1295 = vrot.slane %v1200, 1
        %v1296 = vsel %vm502, %v1294, %v1295
        %v1305 = vmax.f32 %v937, %v1275
        %v1306 = vmax.f32 %v938, %v1278
        %v1307 = vmax.f32 %v939, %v1281
        %v1308 = vmax.f32 %v940, %v1284
        %v1309 = vmax.f32 %v941, %v1287
        %v1310 = vmax.f32 %v942, %v1290
        %v1311 = vmax.f32 %v943, %v1293
        %v1312 = vmax.f32 %v944, %v1296
        %v1329 = vrot.slane %v1113, 1
        %v1330 = vrot.slane %v1114, 1
        %v1331 = vsel %vm502, %v1329, %v1330
        %v1332 = vrot.slane %v1115, 1
        %v1333 = vrot.slane %v1116, 1
        %v1334 = vsel %vm502, %v1332, %v1333
        %v1335 = vrot.slane %v1117, 1
        %v1336 = vrot.slane %v1118, 1
        %v1337 = vsel %vm502, %v1335, %v1336
        %v1338 = vrot.slane %v1119, 1
        %v1339 = vrot.slane %v1120, 1
        %v1340 = vsel %vm502, %v1338, %v1339
        %v1341 = vrot.slane %v1121, 1
        %v1342 = vrot.slane %v1122, 1
        %v1343 = vsel %vm502, %v1341, %v1342
        %v1344 = vrot.slane %v1123, 1
        %v1345 = vrot.slane %v1124, 1
        %v1346 = vsel %vm502, %v1344, %v1345
        %v1347 = vrot.slane %v1125, 1
        %v1348 = vrot.slane %v1126, 1
        %v1349 = vsel %vm502, %v1347, %v1348
        %v1350 = vrot.slane %v1127, 1
        %v1351 = vrot.slane %v1128, 1
        %v1352 = vsel %vm502, %v1350, %v1351
        %v1361 = vmin.f32 %v945, %v1331
        %v1362 = vmin.f32 %v946, %v1334
        %v1363 = vmin.f32 %v947, %v1337
        %v1364 = vmin.f32 %v948, %v1340
        %v1365 = vmin.f32 %v949, %v1343
        %v1366 = vmin.f32 %v950, %v1346
        %v1367 = vmin.f32 %v951, %v1349
        %v1368 = vmin.f32 %v952, %v1352
        %v1385 = vrot.slane %v1201, 1
        %v1386 = vrot.slane %v1202, 1
        %v1387 = vsel %vm502, %v1385, %v1386
        %v1388 = vrot.slane %v1203, 1
        %v1389 = vrot.slane %v1204, 1
        %v1390 = vsel %vm502, %v1388, %v1389
        %v1391 = vrot.slane %v1205, 1
        %v1392 = vrot.slane %v1206, 1
        %v1393 = vsel %vm502, %v1391, %v1392
        %v1394 = vrot.slane %v1207, 1
        %v1395 = vrot.slane %v1208, 1
        %v1396 = vsel %vm502, %v1394, %v1395
        %v1397 = vrot.slane %v1209, 1
        %v1398 = vrot.slane %v1210, 1
        %v1399 = vsel %vm502, %v1397, %v1398
        %v1400 = vrot.slane %v1211, 1
        %v1401 = vrot.slane %v1212, 1
        %v1402 = vsel %vm502, %v1400, %v1401
        %v1403 = vrot.slane %v1213, 1
        %v1404 = vrot.slane %v1214, 1
        %v1405 = vsel %vm502, %v1403, %v1404
        %v1406 = vrot.slane %v1215, 1
        %v1407 = vrot.slane %v1216, 1
        %v1408 = vsel %vm502, %v1406, %v1407
        %v1417 = vmin.f32 %v1305, %v1387
        %v1418 = vmin.f32 %v1306, %v1390
        %v1419 = vmin.f32 %v1307, %v1393
        %v1420 = vmin.f32 %v1308, %v1396
        %v1421 = vmin.f32 %v1309, %v1399
        %v1422 = vmin.f32 %v1310, %v1402
        %v1423 = vmin.f32 %v1311, %v1405
        %v1424 = vmin.f32 %v1312, %v1408
        %v1425 = vmin.f32 %v1417, %v1361
        %v1426 = vmin.f32 %v1418, %v1362
        %v1427 = vmin.f32 %v1419, %v1363
        %v1428 = vmin.f32 %v1420, %v1364
        %v1429 = vmin.f32 %v1421, %v1365
        %v1430 = vmin.f32 %v1422, %v1366
        %v1431 = vmin.f32 %v1423, %v1367
        %v1432 = vmin.f32 %v1424, %v1368
        %v1433 = vmax.f32 %v1417, %v1361
        %v1434 = vmax.f32 %v1418, %v1362
        %v1435 = vmax.f32 %v1419, %v1363
        %v1436 = vmax.f32 %v1420, %v1364
        %v1437 = vmax.f32 %v1421, %v1365
        %v1438 = vmax.f32 %v1422, %v1366
        %v1439 = vmax.f32 %v1423, %v1367
        %v1440 = vmax.f32 %v1424, %v1368
        %v1441 = vmax.f32 %v1249, %v1425
        %v1442 = vmax.f32 %v1250, %v1426
        %v1443 = vmax.f32 %v1251, %v1427
        %v1444 = vmax.f32 %v1252, %v1428
        %v1445 = vmax.f32 %v1253, %v1429
        %v1446 = vmax.f32 %v1254, %v1430
        %v1447 = vmax.f32 %v1255, %v1431
        %v1448 = vmax.f32 %v1256, %v1432
        %v1449 = vmin.f32 %v1441, %v1433
        %v1450 = vmin.f32 %v1442, %v1434
        %v1451 = vmin.f32 %v1443, %v1435
        %v1452 = vmin.f32 %v1444, %v1436
        %v1453 = vmin.f32 %v1445, %v1437
        %v1454 = vmin.f32 %v1446, %v1438
        %v1455 = vmin.f32 %v1447, %v1439
        %v1456 = vmin.f32 %v1448, %v1440
        %vm1457 = vcmask 130048
        %1458 = vst.msk [vmem:[%s143] sm:$0xff] %vm1457, %v1449
        %1459 = vst.msk [vmem:[%s143 + $0x8] sm:$0xff] %vm1457, %v1450
        %1460 = vst.msk [vmem:[%s143 + $0x10] sm:$0xff] %vm1457, %v1451
        %1461 = vst.msk [vmem:[%s143 + $0x18] sm:$0xff] %vm1457, %v1452
        %1462 = vst.msk [vmem:[%s143 + $0x20] sm:$0xff] %vm1457, %v1453
        %1463 = vst.msk [vmem:[%s143 + $0x28] sm:$0xff] %vm1457, %v1454
        %1464 = vst.msk [vmem:[%s143 + $0x30] sm:$0xff] %vm1457, %v1455
        %1465 = vst.msk [vmem:[%s143 + $0x38] sm:$0xff] %vm1457, %v1456
        %s1466 = sand.u32 %s73, 1
        %s1467 = scalar_lea.sflag [#allocation6], %s1466
        %s1468 = sand.u32 %s73, 1
        %s1469 = smul.addr %s1468, 64
        %s1470 = scalar_lea.vmem [#allocation7], %s1469
        // Predicated region
        $region29: #{median_pool2d.1} parent=23 // pred_check
          %p1471 = pneg %p83
        $region30: #{median_pool2d.1} parent=23 // pred_check_branch
          %1473 = sbr.rel (%p1471) target = $region32
        $region31: #{median_pool2d.1} parent=23 // pred_region
          %s1474 = smul.u32 8, %s29
          %1476 = vsyncadd %s1467, 0
          %s1477 = smul.addr %s1474, 2
          %s1478 = sadd.s32 %s30, %s1477
          %s1479 = smul.addr %s1478, 8
          %s1480 = scalar_lea.hbm %s2, %s1479
          %s1481 = sshll.u32 %s1470, 4
          %s1482 = int_to_ptr.vmem [resolvable:$true] %s1481
          %s1483 = sshll.u32 %s1480, 4
          %s1484 = int_to_ptr.hbm [resolvable:$true] %s1483
          %1489 = dma.vmem_to_hbm [thread:$0]  %s1482, 1024, %s1484, %s1467, 128, 256, 8
        $region32: #{median_pool2d.1} parent=23 // pred_fallthru
          _
      $region24: #{median_pool2d.1} parent=5 // pred_fallthru
        _
      %p1490 = scmp.le.s32.totalorder 2, %s20
      // Predicated region
      $region33: #{median_pool2d.1} parent=5 // pred_check
        %p1491 = pneg %p1490
      $region34: #{median_pool2d.1} parent=5 // pred_check_branch
        %1493 = sbr.rel (%p1491) target = $region36
      $region35: #{median_pool2d.1} parent=5 // pred_region
        %s1494 = ssub.s32 %s20, 2
        // Predicated region
        $region37: #{median_pool2d.1} parent=35 // pred_check
          %p1495 = pneg %p89
        $region38: #{median_pool2d.1} parent=35 // pred_check_branch
          %1497 = sbr.rel (%p1495) target = $region40
        $region39: #{median_pool2d.1} parent=35 // pred_region
          %s1498 = sand.u32 %s74, 1
          %s1499 = scalar_lea.sflag [#allocation6], %s1498
          %s1500 = sand.u32 %s74, 1
          %s1501 = smul.addr %s1500, 64
          %s1502 = scalar_lea.vmem [#allocation7], %s1501
          %1504 = dma.done %s1499, 1024
        $region40: #{median_pool2d.1} parent=35 // pred_fallthru
          _
      $region36: #{median_pool2d.1} parent=5 // pred_fallthru
        _
    $region6: #{median_pool2d.1} parent=1 // loop_footer
      %s24 = sadd.s32 1, %s20
    $region7: #{median_pool2d.1} parent=1 // loop_footer_branch
      %19 = sbr.rel target = $region3
    $region8: #{median_pool2d.1} parent=1 // loop_exit
      _
    %1505 = vsyncpa [#allocation5], 1
    %s1506 = scalar_lea.sflag [#allocation5], 1
    %1507 = vsyncpa %s1506, 1
    %1508 = vsyncpa [#allocation6], 1
    %s1509 = scalar_lea.sflag [#allocation6], 1
    %1510 = vsyncpa %s1509, 1

</llo_original>
